<compile_context>
chip_gen: v7x
topology: tpu7x:2x2x1
jax: 0.10.0
libtpu: 0.0.40
codegen_flags: <defaults>
</compile_context>

<pallas_src>
import functools

import jax
import jax.numpy as jnp
from jax.experimental import pallas as pl
from jax.experimental.pallas import tpu as pltpu


# ----------------------------------------------------------------------------
# Table precomputation (hoisted "module buffers", built once).
# ----------------------------------------------------------------------------
def make_rope_tables(dim: int, max_seq_len: int = 2048):
    """sin/cos buffers exactly as the PyTorch __init__ ((max_seq_len, dim//2), f32)."""
    inv_freq = 1.0 / (10000.0 ** (jnp.arange(0, dim, 2, dtype=jnp.float32) / dim))
    position = jnp.arange(max_seq_len, dtype=jnp.float32)
    sincos = jnp.einsum("i,j->ij", position, inv_freq)
    return jnp.sin(sincos), jnp.cos(sincos)


def precompute_rope_kernel_tables(sin_table, cos_table):
    """Kernel-layout tables, built ONCE (not on every forward call).

      cos_dup[l]    = [c0, c0, c1, c1, ...]        (max_seq_len, dim)
      sin_signed[l] = [-s0, +s0, -s1, +s1, ...]    (max_seq_len, dim)

    so that   out = x * cos_dup + pair_swap(x) * sin_signed
    reproduces the interleaved even/odd pair rotation of the PyTorch forward.
    """
    sin = sin_table.astype(jnp.float32)
    cos = cos_table.astype(jnp.float32)
    n, half = sin.shape
    cos_dup = jnp.repeat(cos, 2, axis=-1)
    sin_signed = jnp.stack([-sin, sin], axis=-1).reshape(n, 2 * half)
    return cos_dup, sin_signed


# ----------------------------------------------------------------------------
# Kernel
# ----------------------------------------------------------------------------
def _rope_kernel(x_ref, cos_ref, sin_ref, o_ref, *, heads: int):
    """out[..., 2i]   = x[..., 2i]*cos[i] - x[..., 2i+1]*sin[i]
       out[..., 2i+1] = x[..., 2i]*sin[i] + x[..., 2i+1]*cos[i]

    implemented as  x * cos_dup + pair_swap(x) * sin_signed, where pair_swap is
    built from two lane rolls (XLU slot, free in this mem-bound kernel) and a
    parity select (VPU slot).  sin_signed carries the -/+ sign per parity, so
    only two table streams are needed and the circular wrap of the rolls is
    never selected at pair / head / fold boundaries.
    """
    x = x_ref[...].astype(jnp.float32)              # (tb, tl, F) f32 math
    feat = x.shape[-1]

    cos = cos_ref[...]                              # (tl, D) f32
    sin = sin_ref[...]
    if heads > 1:                                   # broadcast across heads in VMEM
        cos = jnp.tile(cos, (1, heads))             # (tl, F)
        sin = jnp.tile(sin, (1, heads))
    cos = cos[None]                                 # (1, tl, F)
    sin = sin[None]

    lane = jax.lax.broadcasted_iota(jnp.int32, x.shape, 2)
    even = (lane & 1) == 0

    x_next = pltpu.roll(x, feat - 1, axis=2)        # x[..., j+1]
    x_prev = pltpu.roll(x, 1, axis=2)               # x[..., j-1]
    swapped = jnp.where(even, x_next, x_prev)       # (x[2i+1], x[2i]) per pair

    o_ref[...] = (x * cos + swapped * sin).astype(o_ref.dtype)


# ----------------------------------------------------------------------------
# Tiling / VMEM budgeting
# ----------------------------------------------------------------------------
def _choose_tiles(B, L, F, d_tbl, ebytes, budget_bytes=24 << 20):
    """Pick (tb, tl) from the real live set per grid step:
       in + out blocks, double-buffered, native dtype   -> 4 * F * ebytes / row
       ~4 f32 in-kernel temporaries (x, rolls, swapped) -> 16 * F / row
       two f32 table blocks, double-buffered            -> 16 * d_tbl / row
    Target ~24 MiB so depth-2 pipelining fits v7x's 32 MiB scoped VMEM with
    headroom (and trivially fits v5e/v6e's 128 MiB)."""
    per_row = F * (4 * ebytes + 16) + 16 * d_tbl
    max_rows = max(8, budget_bytes // per_row)

    if L <= max_rows:
        tl = L                                       # full dim -> always legal
        tb = int(max(1, min(B, max_rows // max(L, 1))))
    else:
        tb = 1
        tl = int(min(L, max(32, (max_rows // 32) * 32)))  # 32-multiple: ok for any dtype

    # Guarantee >= 2 grid steps along a "parallel" axis when the problem allows
    # it, so v7x's two TensorCores both get work (no-op for perf on v5e/v6e).
    if pl.cdiv(B, tb) * pl.cdiv(L, tl) == 1:
        if B > 1:
            tb = (B + 1) // 2
        elif L >= 64:
            half = ((L // 2 + 31) // 32) * 32
            if 0 < half < L:
                tl = half
    return tb, tl


# ----------------------------------------------------------------------------
# Wrapper
# ----------------------------------------------------------------------------
def rotary_embedding(x, cos_dup, sin_signed, *, donate_x=False):
    """Apply RoPE to a (B, L, num_heads, head_dim) or (B, L, D) tensor."""
    orig_shape = x.shape
    if x.ndim == 4:
        B, L, H, D = x.shape
    elif x.ndim == 3:
        B, L, D = x.shape
        H = 1
    else:
        raise ValueError(f"Unsupported input shape: {x.shape}")
    if D % 2 != 0:
        raise ValueError("Feature dimension must be even for RoPE")
    max_len, d_tbl = cos_dup.shape
    if d_tbl != D:
        raise ValueError(f"Table feature dim {d_tbl} != input feature dim {D}")
    if L > max_len:
        raise ValueError(f"Sequence length {L} exceeds table length {max_len}")

    F = H * D
    xf = x.reshape(B, L, F)                 # free contiguous view, heads on lanes
    cos_l = cos_dup[:L]                     # (L, D) — tiny slice, tables built once
    sin_l = sin_signed[:L]

    # Lane-dense fold for narrow features (single-head, F < 128): pack k
    # positions per row so stores are unmasked full-width vst.
    heads = H
    L_eff, F_eff = L, F
    if H == 1 and F < 128 and (128 % F == 0) and (L % (128 // F) == 0):
        k = 128 // F
        L_eff, F_eff = L // k, F * k
        xf = xf.reshape(B, L_eff, F_eff)
        cos_l = cos_l.reshape(L_eff, F_eff)
        sin_l = sin_l.reshape(L_eff, F_eff)

    d_eff = cos_l.shape[-1]
    ebytes = jnp.dtype(x.dtype).itemsize
    tb, tl = _choose_tiles(B, L_eff, F_eff, d_eff, ebytes)

    # Grid: L tiles outer, B tiles inner (fastest) -> the table block index is
    # constant across consecutive steps, so Pallas skips re-fetching the tables.
    grid = (pl.cdiv(L_eff, tl), pl.cdiv(B, tb))
    x_spec = pl.BlockSpec((tb, tl, F_eff), lambda j, i: (i, j, 0))
    tbl_spec = pl.BlockSpec((tl, d_eff), lambda j, i: (j, 0))

    out = pl.pallas_call(
        functools.partial(_rope_kernel, heads=heads),
        out_shape=jax.ShapeDtypeStruct((B, L_eff, F_eff), x.dtype),
        grid=grid,
        in_specs=[x_spec, tbl_spec, tbl_spec],
        out_specs=x_spec,
        input_output_aliases=({0: 0} if donate_x else {}),
        compiler_params=pltpu.CompilerParams(
            dimension_semantics=("parallel", "parallel"),
            vmem_limit_bytes=32 * 1024 * 1024,
        ),
    )(xf, cos_l, sin_l)

    return out.reshape(orig_shape)


# ----------------------------------------------------------------------------
# Pure-JAX reference (mirrors the PyTorch forward exactly)
# ----------------------------------------------------------------------------
def rope_reference(x, sin_table, cos_table):
    if x.ndim == 4:
        B, L, H, D = x.shape
        xr = x.reshape(B, L, H, D // 2, 2)
        sin = sin_table[:L][None, :, None, :]
        cos = cos_table[:L][None, :, None, :]
    else:
        B, L, D = x.shape
        xr = x.reshape(B, L, D // 2, 2)
        sin = sin_table[:L][None, :, :]
        cos = cos_table[:L][None, :, :]
    x1 = xr[..., 0]
    x2 = xr[..., 1]
    rotated = jnp.stack([x1 * cos - x2 * sin, x1 * sin + x2 * cos], axis=-1)
    return rotated.reshape(x.shape)


if __name__ == "__main__":
    key = jax.random.PRNGKey(0)
    k1, k2 = jax.random.split(key)

    dim = 32           # head_dim (== module's `dim`)
    max_seq_len = 128
    sin_t, cos_t = make_rope_tables(dim, max_seq_len)
    cos_dup, sin_signed = precompute_rope_kernel_tables(sin_t, cos_t)  # built once

    # 4-D case: (B, L, num_heads, head_dim)
    x4 = jax.random.normal(k1, (2, 8, 4, dim), dtype=jnp.float32)
    out4 = jax.block_until_ready(rotary_embedding(x4, cos_dup, sin_signed))
    ref4 = rope_reference(x4, sin_t, cos_t)
    assert out4.shape == x4.shape
    assert jnp.allclose(out4, ref4, atol=1e-5, rtol=1e-5)

    # 3-D case: (B, L, D)  — exercises the lane-dense position fold (F < 128)
    x3 = jax.random.normal(k2, (2, 8, dim), dtype=jnp.float32)
    out3 = jax.block_until_ready(rotary_embedding(x3, cos_dup, sin_signed))
    ref3 = rope_reference(x3, sin_t, cos_t)
    assert out3.shape == x3.shape
    assert jnp.allclose(out3, ref3, atol=1e-5, rtol=1e-5)

    print("KERNEL_OK")
</pallas_src>

<mosaic_0001>
module attributes {stable_mosaic.version = 11 : i64} {
  func.func @_rope_kernel(%arg0: i32, %arg1: i32, %arg2: memref<1x8x128xf32, #tpu.memory_space<vmem>>, %arg3: memref<8x32xf32, #tpu.memory_space<vmem>>, %arg4: memref<8x32xf32, #tpu.memory_space<vmem>>, %arg5: memref<1x8x128xf32, #tpu.memory_space<vmem>>) attributes {dimension_semantics = [#tpu.dimension_semantics<parallel>, #tpu.dimension_semantics<parallel>], iteration_bounds = array<i64: 1, 2>, scalar_prefetch = 0 : i64, scratch_operands = 0 : i64, tpu.core_type = #tpu.core_type<tc>, window_params = [{transform_indices = @transform_0, window_bounds = array<i64: 1, 8, 128>}, {transform_indices = @transform_1, window_bounds = array<i64: 8, 32>}, {transform_indices = @transform_2, window_bounds = array<i64: 8, 32>}, {transform_indices = @transform_3, window_bounds = array<i64: 1, 8, 128>}]} {
    %c0 = arith.constant 0 : index
    %c0_0 = arith.constant 0 : index
    %c0_1 = arith.constant 0 : index
    %0 = vector.load %arg2[%c0, %c0_0, %c0_1] : memref<1x8x128xf32, #tpu.memory_space<vmem>>, vector<1x8x128xf32>
    %c0_2 = arith.constant 0 : index
    %c0_3 = arith.constant 0 : index
    %1 = vector.load %arg3[%c0_2, %c0_3] : memref<8x32xf32, #tpu.memory_space<vmem>>, vector<8x32xf32>
    %c0_4 = arith.constant 0 : index
    %c0_5 = arith.constant 0 : index
    %2 = vector.load %arg4[%c0_4, %c0_5] : memref<8x32xf32, #tpu.memory_space<vmem>>, vector<8x32xf32>
    %3 = tpu.concatenate %1, %1, %1, %1 in 1 : vector<8x32xf32>, vector<8x32xf32>, vector<8x32xf32>, vector<8x32xf32> -> vector<8x128xf32>
    %4 = tpu.concatenate %2, %2, %2, %2 in 1 : vector<8x32xf32>, vector<8x32xf32>, vector<8x32xf32>, vector<8x32xf32> -> vector<8x128xf32>
    %5 = vector.shape_cast %3 : vector<8x128xf32> to vector<1x8x128xf32>
    %6 = vector.shape_cast %4 : vector<8x128xf32> to vector<1x8x128xf32>
    %7 = tpu.iota {dimensions = array<i32: 2>} : vector<1x8x128xi32>
    %c1_i32 = arith.constant 1 : i32
    %8 = vector.broadcast %c1_i32 : i32 to vector<1x8x128xi32>
    %9 = arith.andi %7, %8 : vector<1x8x128xi32>
    %c0_i32 = arith.constant 0 : i32
    %10 = vector.broadcast %c0_i32 : i32 to vector<1x8x128xi32>
    %11 = arith.cmpi eq, %9, %10 : vector<1x8x128xi32>
    %c127_i32 = arith.constant 127 : i32
    %12 = tpu.dynamic_rotate %0 by %c127_i32 dim 2 : vector<1x8x128xf32>, i32 -> vector<1x8x128xf32>
    %c1_i32_6 = arith.constant 1 : i32
    %13 = tpu.dynamic_rotate %0 by %c1_i32_6 dim 2 : vector<1x8x128xf32>, i32 -> vector<1x8x128xf32>
    %14 = arith.select %11, %12, %13 : vector<1x8x128xi1>, vector<1x8x128xf32>
    %15 = arith.mulf %0, %5 : vector<1x8x128xf32>
    %16 = arith.mulf %14, %6 : vector<1x8x128xf32>
    %17 = arith.addf %15, %16 : vector<1x8x128xf32>
    %c0_7 = arith.constant 0 : index
    %c0_8 = arith.constant 0 : index
    %c0_9 = arith.constant 0 : index
    %18 = vector.load %arg5[%c0_7, %c0_8, %c0_9] : memref<1x8x128xf32, #tpu.memory_space<vmem>>, vector<1x8x128xf32>
    tpu.vector_store %arg5[%c0_7, %c0_8, %c0_9], %17 {strides = array<i32>} : memref<1x8x128xf32, #tpu.memory_space<vmem>>, vector<1x8x128xf32>,
    return
  }
  func.func @transform_0(%arg0: i32, %arg1: i32) -> (i32, i32, i32) {
    %c0_i32 = arith.constant 0 : i32
    %c0_i32_0 = arith.constant 0 : i32
    return %arg1, %arg0, %c0_i32 : i32, i32, i32
  }
  func.func @transform_1(%arg0: i32, %arg1: i32) -> (i32, i32) {
    %c0_i32 = arith.constant 0 : i32
    %c0_i32_0 = arith.constant 0 : i32
    return %arg0, %c0_i32 : i32, i32
  }
  func.func @transform_2(%arg0: i32, %arg1: i32) -> (i32, i32) {
    %c0_i32 = arith.constant 0 : i32
    %c0_i32_0 = arith.constant 0 : i32
    return %arg0, %c0_i32 : i32, i32
  }
  func.func @transform_3(%arg0: i32, %arg1: i32) -> (i32, i32, i32) {
    %c0_i32 = arith.constant 0 : i32
    %c0_i32_0 = arith.constant 0 : i32
    return %arg1, %arg0, %c0_i32 : i32, i32, i32
  }
}

</mosaic_0001>

<llo_original>
// kernel: tpu_custom_call.1
$region0: #{tpu_custom_call.1}
  #allocation0 [shape = 'u32[]', space=smem, size = 0x4, offset = 0x4, fixed_abs, tag = 'smem constant byte address 0x4 - core index']
  #allocation1 [shape = 'u32[144,128]{1,0:T(1,128)}', space=vmem, size = 0x12000, scoped, tag = 'internal scratch']
  %s0 = inlined_call_operand.hbm [shape: f32[2,8,128], index: 0, kind: input, shape index: {}]
  %s1 = inlined_call_operand.hbm [shape: f32[8,32], index: 1, kind: input, shape index: {}]
  %s2 = inlined_call_operand.hbm [shape: f32[8,32], index: 2, kind: input, shape index: {}]
  %s3 = inlined_call_operand.hbm [shape: f32[2,8,128], index: 3, kind: output, shape index: {}]
  %s4 = sld [smem:[#allocation0]]
  $region57: #{tpu_custom_call.1} parent=0
    _
  %s6 = ssub.s32 1, %s4
  %s7 = scalar_select 0, %s6, %s4
  $region1: #{tpu_custom_call.1} parent=0
    #allocation2 [shape = 'u8[8192]{0}', space=vmem, size = 0x2000, scoped, tag = 'input window, operand 0']
    #allocation3 [shape = 's32[2]{0}', space=sflag, size = 0x8, scoped, tag = 'scoped memory for tpu_custom_call.1']
    #allocation4 [shape = 's32[2]{0}', space=sflag, size = 0x8, scoped, tag = 'scoped memory for tpu_custom_call.1']
    #allocation5 [shape = 'u8[4096]{0}', space=vmem, size = 0x1000, scoped, tag = 'input window, operand 1, single buffered']
    #allocation6 [shape = 's32[1]{0}', space=sflag, size = 0x4, scoped, tag = 'scoped memory for tpu_custom_call.1']
    #allocation7 [shape = 'u8[4096]{0}', space=vmem, size = 0x1000, scoped, tag = 'input window, operand 2, single buffered']
    #allocation8 [shape = 'u8[8192]{0}', space=vmem, size = 0x2000, scoped, tag = 'output window, operand 0']
    %8 = vsyncpa [#allocation3], 0
    %s9 = scalar_lea.sflag [#allocation3], 1
    %10 = vsyncpa %s9, 0
    %11 = vsyncpa [#allocation6], 0
    %12 = vsyncpa [#allocation4], 0
    %s13 = scalar_lea.sflag [#allocation4], 1
    %14 = vsyncpa %s13, 0
    loop: start=0, step=1, limit=4
    $region2: #{tpu_custom_call.1} parent=1 // loop_pre_header
      _
    $region3: #{tpu_custom_call.1} parent=1 // loop_header
      %s16 = sphi 0, %s20
      %p17 = scmp.ge.s32.totalorder %s16, 4
      %s23 = sphi 0, %s35
      %s24 = sphi 0, %s31
      %s25 = sphi 0, %s23
      %s26 = sphi 0, %s24
      %s27 = sphi 0, %s25
      %s28 = sphi 0, %s26
      %s40 = sphi 0, %s42
      %s43 = sphi 0, %s40
      %s44 = sphi 0, %s43
      %s60 = sphi 0, %s44
      %s66 = sphi 0, %s68
      %s69 = sphi 0, %s66
      %s70 = sphi 0, %s69
      %s86 = sphi 0, %s70
      %s92 = sphi 0, %s94
      %s95 = sphi 0, %s92
      %s96 = sphi 0, %s95
      %s112 = sphi 0, %s96
      %s120 = sphi 0, %s122
      %s123 = sphi 0, %s120
      %s124 = sphi 0, %s123
      %s140 = sphi 0, %s124
    $region4: #{tpu_custom_call.1} parent=1 // loop_header_branch
      %19 = sbr.rel (%p17) target = $region8
    $region5: #{tpu_custom_call.1} parent=1 // loop_body
      %s21 = ssub.s32 %s16, 1
      %s22 = ssub.s32 %s16, 2
      %s29 = sadd.s32 1, %s24
      %p30 = scmp.ge.s32.totalorder %s29, 2
      %s31 = scalar_select %p30, 0, %s29
      %s32 = sadd.s32 1, %s23
      %s33 = scalar_select %p30, %s32, %s23
      %p34 = scmp.ge.s32.totalorder %s33, 1
      %s35 = scalar_select %p34, 0, %s33
      %s36 = ssub.s32 %s24, %s31
      %s37 = ssub.s32 %s23, %s35
      %s38 = sor.u32 %s36, %s37
      %p39 = scmp.eq.s32.totalorder %s38, 0
      %s41 = sadd.s32 %s40, 1
      %s42 = scalar_select %p39, %s40, %s41
      %p45 = pneg %p39
      %p46 = scmp.eq.s32.totalorder %s16, 1
      %p47 = por %p45, %p46
      %p48 = scmp.ne.s32.totalorder %s40, %s43
      %p49 = scmp.eq.s32.totalorder %s16, 0
      %p50 = por %p48, %p49
      %p51 = scmp.ne.s32.totalorder %s40, %s43
      %p52 = scmp.eq.s32.totalorder %s21, 1
      %p53 = por %p51, %p52
      %p54 = scmp.ne.s32.totalorder %s43, %s44
      %p55 = scmp.eq.s32.totalorder %s21, 0
      %p56 = por %p54, %p55
      %p57 = scmp.ne.s32.totalorder %s43, %s44
      %p58 = scmp.eq.s32.totalorder %s22, 1
      %p59 = por %p57, %p58
      %p61 = scmp.ne.s32.totalorder %s44, %s60
      %p62 = scmp.eq.s32.totalorder %s22, 0
      %p63 = por %p61, %p62
      %s64 = ssub.s32 %s23, %s35
      %p65 = scmp.eq.s32.totalorder %s64, 0
      %s67 = sadd.s32 %s66, 1
      %s68 = scalar_select %p65, %s66, %s67
      %p71 = pneg %p65
      %p72 = scmp.eq.s32.totalorder %s16, 1
      %p73 = por %p71, %p72
      %p74 = scmp.ne.s32.totalorder %s66, %s69
      %p75 = scmp.eq.s32.totalorder %s16, 0
      %p76 = por %p74, %p75
      %p77 = scmp.ne.s32.totalorder %s66, %s69
      %p78 = scmp.eq.s32.totalorder %s21, 1
      %p79 = por %p77, %p78
      %p80 = scmp.ne.s32.totalorder %s69, %s70
      %p81 = scmp.eq.s32.totalorder %s21, 0
      %p82 = por %p80, %p81
      %p83 = scmp.ne.s32.totalorder %s69, %s70
      %p84 = scmp.eq.s32.totalorder %s22, 1
      %p85 = por %p83, %p84
      %p87 = scmp.ne.s32.totalorder %s70, %s86
      %p88 = scmp.eq.s32.totalorder %s22, 0
      %p89 = por %p87, %p88
      %s90 = ssub.s32 %s23, %s35
      %p91 = scmp.eq.s32.totalorder %s90, 0
      %s93 = sadd.s32 %s92, 1
      %s94 = scalar_select %p91, %s92, %s93
      %p97 = pneg %p91
      %p98 = scmp.eq.s32.totalorder %s16, 1
      %p99 = por %p97, %p98
      %p100 = scmp.ne.s32.totalorder %s92, %s95
      %p101 = scmp.eq.s32.totalorder %s16, 0
      %p102 = por %p100, %p101
      %p103 = scmp.ne.s32.totalorder %s92, %s95
      %p104 = scmp.eq.s32.totalorder %s21, 1
      %p105 = por %p103, %p104
      %p106 = scmp.ne.s32.totalorder %s95, %s96
      %p107 = scmp.eq.s32.totalorder %s21, 0
      %p108 = por %p106, %p107
      %p109 = scmp.ne.s32.totalorder %s95, %s96
      %p110 = scmp.eq.s32.totalorder %s22, 1
      %p111 = por %p109, %p110
      %p113 = scmp.ne.s32.totalorder %s96, %s112
      %p114 = scmp.eq.s32.totalorder %s22, 0
      %p115 = por %p113, %p114
      %s116 = ssub.s32 %s24, %s31
      %s117 = ssub.s32 %s23, %s35
      %s118 = sor.u32 %s116, %s117
      %p119 = scmp.eq.s32.totalorder %s118, 0
      %s121 = sadd.s32 %s120, 1
      %s122 = scalar_select %p119, %s120, %s121
      %p125 = pneg %p119
      %p126 = scmp.eq.s32.totalorder %s16, 1
      %p127 = por %p125, %p126
      %p128 = scmp.ne.s32.totalorder %s120, %s123
      %p129 = scmp.eq.s32.totalorder %s16, 0
      %p130 = por %p128, %p129
      %p131 = scmp.ne.s32.totalorder %s120, %s123
      %p132 = scmp.eq.s32.totalorder %s21, 1
      %p133 = por %p131, %p132
      %p134 = scmp.ne.s32.totalorder %s123, %s124
      %p135 = scmp.eq.s32.totalorder %s21, 0
      %p136 = por %p134, %p135
      %p137 = scmp.ne.s32.totalorder %s123, %s124
      %p138 = scmp.eq.s32.totalorder %s22, 1
      %p139 = por %p137, %p138
      %p141 = scmp.ne.s32.totalorder %s124, %s140
      %p142 = scmp.eq.s32.totalorder %s22, 0
      %p143 = por %p141, %p142
      %p144 = scmp.le.s32.totalorder 1, %s16
      %p145 = scmp.lt.s32.totalorder %s16, 3
      %p146 = pnand %p144, %p145
      %p147 = pneg %p146
      // Predicated region
      $region9: #{tpu_custom_call.1} parent=5 // pred_check
        _
      $region10: #{tpu_custom_call.1} parent=5 // pred_check_branch
        %149 = sbr.rel (%p146) target = $region12
      $region11: #{tpu_custom_call.1} parent=5 // pred_region
        %s150 = ssub.s32 %s16, 1
        // Predicated region
        $region13: #{tpu_custom_call.1} parent=11 // pred_check
          %p151 = pneg %p82
        $region14: #{tpu_custom_call.1} parent=11 // pred_check_branch
          %153 = sbr.rel (%p151) target = $region16
        $region15: #{tpu_custom_call.1} parent=11 // pred_region
          %s155 = ssub.s32 128, 128
          %156 = vsyncadd [#allocation6], %s155
          %s157 = smul.addr %s25, 128
          %s158 = scalar_lea.hbm %s1, %s157
          %s160 = sshll.u32 [#allocation5], 4
          %s161 = int_to_ptr.vmem [resolvable:$true] %s160
          %163 = dma.hbm_to_vmem [thread:$0]  %s158, 128, %s161, [#allocation6]
        $region16: #{tpu_custom_call.1} parent=11 // pred_fallthru
          _
        // Predicated region
        $region17: #{tpu_custom_call.1} parent=11 // pred_check
          %p164 = pneg %p108
        $region18: #{tpu_custom_call.1} parent=11 // pred_check_branch
          %166 = sbr.rel (%p164) target = $region20
        $region19: #{tpu_custom_call.1} parent=11 // pred_region
          %s168 = ssub.s32 128, 128
          %169 = vsyncadd [#allocation6], %s168
          %s170 = smul.addr %s25, 128
          %s171 = scalar_lea.hbm %s2, %s170
          %s173 = sshll.u32 [#allocation7], 4
          %s174 = int_to_ptr.vmem [resolvable:$true] %s173
          %176 = dma.hbm_to_vmem [thread:$0]  %s171, 128, %s174, [#allocation6]
        $region20: #{tpu_custom_call.1} parent=11 // pred_fallthru
          _
      $region12: #{tpu_custom_call.1} parent=5 // pred_fallthru
        _
      %p177 = scmp.lt.s32.totalorder %s16, 2
      // Predicated region
      $region21: #{tpu_custom_call.1} parent=5 // pred_check
        %p178 = pneg %p177
      $region22: #{tpu_custom_call.1} parent=5 // pred_check_branch
        %180 = sbr.rel (%p178) target = $region24
      $region23: #{tpu_custom_call.1} parent=5 // pred_region
        // Predicated region
        $region25: #{tpu_custom_call.1} parent=23 // pred_check
          %p181 = pneg %p50
        $region26: #{tpu_custom_call.1} parent=23 // pred_check_branch
          %183 = sbr.rel (%p181) target = $region28
        $region27: #{tpu_custom_call.1} parent=23 // pred_region
          %s184 = sand.u32 %s40, 1
          %s185 = scalar_lea.sflag [#allocation3], %s184
          %s186 = sand.u32 %s40, 1
          %s187 = smul.addr %s186, 8
          %s188 = scalar_lea.vmem [#allocation2], %s187
          %s190 = ssub.s32 128, 128
          %191 = vsyncadd %s185, %s190
          %s192 = sadd.s32 %s23, %s24
          %s193 = smul.addr %s192, 128
          %s194 = scalar_lea.hbm %s0, %s193
          %s196 = sshll.u32 %s188, 4
          %s197 = int_to_ptr.vmem [resolvable:$true] %s196
          %199 = dma.hbm_to_vmem [thread:$0]  %s194, 128, %s197, %s185
        $region28: #{tpu_custom_call.1} parent=23 // pred_fallthru
          _
      $region24: #{tpu_custom_call.1} parent=5 // pred_fallthru
        _
      %p200 = scmp.le.s32.totalorder 1, %s16
      %p201 = scmp.lt.s32.totalorder %s16, 3
      %p202 = pnand %p200, %p201
      %p203 = pneg %p202
      // Predicated region
      $region29: #{tpu_custom_call.1} parent=5 // pred_check
        _
      $region30: #{tpu_custom_call.1} parent=5 // pred_check_branch
        %205 = sbr.rel (%p202) target = $region32
      $region31: #{tpu_custom_call.1} parent=5 // pred_region
        %s206 = ssub.s32 %s16, 1
        %s207 = sand.u32 %s43, 1
        %s208 = scalar_lea.sflag [#allocation3], %s207
        %s209 = sand.u32 %s43, 1
        %s210 = smul.addr %s209, 8
        %s211 = scalar_lea.vmem [#allocation2], %s210
        // Predicated region
        $region33: #{tpu_custom_call.1} parent=31 // pred_check
          %p212 = pneg %p56
        $region34: #{tpu_custom_call.1} parent=31 // pred_check_branch
          %214 = sbr.rel (%p212) target = $region36
        $region35: #{tpu_custom_call.1} parent=31 // pred_region
          %215 = dma.done %s208, 128
        $region36: #{tpu_custom_call.1} parent=31 // pred_fallthru
          _
        // Predicated region
        $region37: #{tpu_custom_call.1} parent=31 // pred_check
          %p216 = pneg %p82
        $region38: #{tpu_custom_call.1} parent=31 // pred_check_branch
          %218 = sbr.rel (%p216) target = $region40
        $region39: #{tpu_custom_call.1} parent=31 // pred_region
          %219 = dma.done [#allocation6], 128
        $region40: #{tpu_custom_call.1} parent=31 // pred_fallthru
          _
        // Predicated region
        $region41: #{tpu_custom_call.1} parent=31 // pred_check
          %p220 = pneg %p108
        $region42: #{tpu_custom_call.1} parent=31 // pred_check_branch
          %222 = sbr.rel (%p220) target = $region44
        $region43: #{tpu_custom_call.1} parent=31 // pred_region
          %223 = dma.done [#allocation6], 128
        $region44: #{tpu_custom_call.1} parent=31 // pred_fallthru
          _
        %s224 = sand.u32 %s43, 1
        %s225 = scalar_lea.sflag [#allocation3], %s224
        %s226 = sand.u32 %s43, 1
        %s227 = smul.addr %s226, 8
        %s228 = scalar_lea.vmem [#allocation2], %s227
        %p229 = pneg %p56
        %p230 = pneg %p53
        %p231 = pneg %p82
        %p232 = pneg %p79
        %p233 = pneg %p108
        %p234 = pneg %p105
        %p235 = pneg %p136
        %p236 = pneg %p133
        %s237 = sand.u32 %s123, 1
        %s238 = scalar_lea.sflag [#allocation4], %s237
        %s239 = sand.u32 %s123, 1
        %s240 = smul.addr %s239, 8
        %s241 = scalar_lea.vmem [#allocation8], %s240
        %v242 = vld [vmem:[%s211] sm:$0xff]
        %v243 = vld [vmem:[#allocation5] sm:$0xff]
        %v244 = vld [vmem:[#allocation7] sm:$0xff]
        %246 = vrot.lane.b32.xlu0 %v243, 32
        %v247 = vpop.permute.xlu0 %246
        %249 = vrot.lane.b32.xlu0 %v243, 64
        %v250 = vpop.permute.xlu0 %249
        %252 = vrot.lane.b32.xlu0 %v243, 96
        %v253 = vpop.permute.xlu0 %252
        %vm255 = vcmask 261120
        %v256 = vsel %vm255, %v243, %v247
        %vm257 = vcmask 523264
        %v258 = vsel %vm257, %v256, %v250
        %vm259 = vcmask 785408
        %v260 = vsel %vm259, %v258, %v253
        %262 = vrot.lane.b32.xlu0 %v244, 32
        %v263 = vpop.permute.xlu0 %262
        %265 = vrot.lane.b32.xlu0 %v244, 64
        %v266 = vpop.permute.xlu0 %265
        %268 = vrot.lane.b32.xlu0 %v244, 96
        %v269 = vpop.permute.xlu0 %268
        %v271 = vsel %vm255, %v244, %v263
        %v272 = vsel %vm257, %v271, %v266
        %v273 = vsel %vm259, %v272, %v269
        %v274 = vlaneseq
        %v275 = vand.u32 %v274, 127
        %v276 = vand.u32 %v275, 1
        %vm277 = vcmp.eq.s32.totalorder %v276, 0
        %278 = vrot.lane.b32.xlu0 %v242, 127
        %v279 = vpop.permute.xlu0 %278
        %280 = vrot.lane.b32.xlu0 %v242, 1
        %v281 = vpop.permute.xlu0 %280
        %v282 = vsel %vm277, %v279, %v281
        %v283 = vmul.f32 %v242, %v260
        %v284 = vmul.f32 %v282, %v273
        %v285 = vadd.f32 %v283, %v284
        %286 = vst [vmem:[%s241] sm:$0xff] %v285
        %s287 = sand.u32 %s123, 1
        %s288 = scalar_lea.sflag [#allocation4], %s287
        %s289 = sand.u32 %s123, 1
        %s290 = smul.addr %s289, 8
        %s291 = scalar_lea.vmem [#allocation8], %s290
        // Predicated region
        $region45: #{tpu_custom_call.1} parent=31 // pred_check
          %p292 = pneg %p133
        $region46: #{tpu_custom_call.1} parent=31 // pred_check_branch
          %294 = sbr.rel (%p292) target = $region48
        $region47: #{tpu_custom_call.1} parent=31 // pred_region
          %s296 = ssub.s32 128, 128
          %297 = vsyncadd %s288, %s296
          %s298 = sadd.s32 %s25, %s26
          %s299 = smul.addr %s298, 128
          %s300 = scalar_lea.hbm %s3, %s299
          %s302 = sshll.u32 %s291, 4
          %s303 = int_to_ptr.vmem [resolvable:$true] %s302
          %305 = dma.vmem_to_hbm [thread:$0]  %s303, 128, %s300, %s288
        $region48: #{tpu_custom_call.1} parent=31 // pred_fallthru
          _
      $region32: #{tpu_custom_call.1} parent=5 // pred_fallthru
        _
      %p306 = scmp.le.s32.totalorder 2, %s16
      // Predicated region
      $region49: #{tpu_custom_call.1} parent=5 // pred_check
        %p307 = pneg %p306
      $region50: #{tpu_custom_call.1} parent=5 // pred_check_branch
        %309 = sbr.rel (%p307) target = $region52
      $region51: #{tpu_custom_call.1} parent=5 // pred_region
        %s310 = ssub.s32 %s16, 2
        // Predicated region
        $region53: #{tpu_custom_call.1} parent=51 // pred_check
          %p311 = pneg %p139
        $region54: #{tpu_custom_call.1} parent=51 // pred_check_branch
          %313 = sbr.rel (%p311) target = $region56
        $region55: #{tpu_custom_call.1} parent=51 // pred_region
          %s314 = sand.u32 %s124, 1
          %s315 = scalar_lea.sflag [#allocation4], %s314
          %s316 = sand.u32 %s124, 1
          %s317 = smul.addr %s316, 8
          %s318 = scalar_lea.vmem [#allocation8], %s317
          %319 = dma.done %s315, 128
        $region56: #{tpu_custom_call.1} parent=51 // pred_fallthru
          _
      $region52: #{tpu_custom_call.1} parent=5 // pred_fallthru
        _
    $region6: #{tpu_custom_call.1} parent=1 // loop_footer
      %s20 = sadd.s32 1, %s16
    $region7: #{tpu_custom_call.1} parent=1 // loop_footer_branch
      %15 = sbr.rel target = $region3
    $region8: #{tpu_custom_call.1} parent=1 // loop_exit
      _
    %320 = vsyncpa [#allocation3], 1
    %s321 = scalar_lea.sflag [#allocation3], 1
    %322 = vsyncpa %s321, 1
    %323 = vsyncpa [#allocation6], 1
    %324 = vsyncpa [#allocation4], 1
    %s325 = scalar_lea.sflag [#allocation4], 1
    %326 = vsyncpa %s325, 1

</llo_original>
